<compile_context>
chip_gen: v7x
topology: tpu7x:2x2x1
jax: 0.10.0
libtpu: 0.0.40
codegen_flags: <defaults>
</compile_context>

<pallas_src>
import functools

import numpy as np
import jax
import jax.numpy as jnp
from jax.experimental import pallas as pl
from jax.experimental.pallas import tpu as pltpu

NEG_BIG = -9.0e15  # matches the PyTorch -9000000000000000.0 mask constant


# ----------------------------- Pallas kernel --------------------------------

def gat_kernel(hc_ref, w_ref, a1row_ref, a2col_ref, adjt_ref, out_ref, *,
               alpha, apply_elu):
    """One batch element: (2N, Din) features -> (2N, Dout) attended features."""
    hc = hc_ref[...]                                              # (2N, Din)
    wh = jnp.dot(hc, w_ref[...],
                 preferred_element_type=jnp.float32)              # (2N, Dout)  MXU

    # Score projections. Logits are built in transposed (j, i) orientation:
    #   e_t[j, i] = LeakyReLU(Wh1[i] + Wh2[j])  with Wh1 = Wh@a1, Wh2 = Wh@a2
    wh2_col = jnp.dot(wh, a2col_ref[...],
                      preferred_element_type=jnp.float32)         # (2N, 1)
    wh1_row = jnp.dot(a1row_ref[...], wh.T,
                      preferred_element_type=jnp.float32)         # (1, 2N)
    e_t = wh2_col + wh1_row                                       # (2N, 2N)
    e_t = jnp.where(e_t > 0, e_t, alpha * e_t)                    # LeakyReLU(alpha)

    # Mask with adj^T, then softmax over node index i (PyTorch dim=1) == last axis here.
    logits_t = jnp.where(adjt_ref[...] > 0, e_t, NEG_BIG)
    m = jnp.max(logits_t, axis=-1, keepdims=True)
    p = jnp.exp(logits_t - m)
    att_t = p / jnp.sum(p, axis=-1, keepdims=True)                # (2N_j, 2N_i)
    # TODO(synk): F.dropout(attention, p=dropout) treated as identity (eval mode).

    # h_prime[i, :] = sum_j att[i, j] * Wh[j, :], with att[i, j] = att_t[j, i]
    hp = jnp.dot(att_t.T, wh, preferred_element_type=jnp.float32)  # (2N, Dout) MXU

    if apply_elu:
        hp = jnp.where(hp > 0, hp, jnp.exp(jnp.minimum(hp, 0.0)) - 1.0)  # ELU

    out_ref[...] = hp


# ------------------------------- JAX wrapper ----------------------------------

def gat_forward_pallas(h, ht, adj, W, a, *, alpha, concat=True):
    B, N, Din = h.shape
    Dout = W.shape[1]
    M = 2 * N

    hc = jnp.concatenate([ht, h], axis=1).astype(jnp.float32)      # (B, 2N, Din)
    a1_row = jnp.asarray(a[:Dout], jnp.float32).reshape(1, Dout)   # (1, Dout)
    a2_col = jnp.asarray(a[Dout:], jnp.float32).reshape(Dout, 1)   # (Dout, 1)
    adj_t = jnp.asarray(adj, jnp.float32).T                        # (2N, 2N)

    kernel = functools.partial(gat_kernel, alpha=float(alpha),
                               apply_elu=bool(concat))

    hp = pl.pallas_call(
        kernel,
        out_shape=jax.ShapeDtypeStruct((B, M, Dout), jnp.float32),
        grid=(B,),
        in_specs=[
            pl.BlockSpec((None, M, Din), lambda b: (b, 0, 0)),  # hc, batch squeezed
            pl.BlockSpec((Din, Dout), lambda b: (0, 0)),        # W       (invariant)
            pl.BlockSpec((1, Dout), lambda b: (0, 0)),          # a1^T    (invariant)
            pl.BlockSpec((Dout, 1), lambda b: (0, 0)),          # a2      (invariant)
            pl.BlockSpec((M, M), lambda b: (0, 0)),             # adj^T   (invariant)
        ],
        out_specs=pl.BlockSpec((None, M, Dout), lambda b: (b, 0, 0)),
        compiler_params=pltpu.CompilerParams(
            dimension_semantics=("parallel",),   # batch across TCs on v7x
            vmem_limit_bytes=32 * 1024 * 1024,
        ),
    )(hc, jnp.asarray(W, jnp.float32), a1_row, a2_col, adj_t)

    # h_prime = cat([h_prime[:, :N], h_prime[:, N:]], dim=-1); ELU already applied.
    out = jnp.concatenate([hp[:, :N, :], hp[:, N:, :]], axis=-1)   # (B, N, 2*Dout)
    return out


# --------------------------- pure-JAX reference -------------------------------

def gat_ref(h, ht, adj, W, a, alpha, concat=True):
    N = h.shape[1]
    Dout = W.shape[1]
    hc = jnp.concatenate([ht, h], axis=1)                          # (B, 2N, Din)
    wh = jnp.einsum("bni,io->bno", hc, W)                          # (B, 2N, Dout)
    wh1 = wh @ a[:Dout]                                            # (B, 2N, 1)
    wh2 = wh @ a[Dout:]                                            # (B, 2N, 1)
    e = jax.nn.leaky_relu(wh1 + jnp.swapaxes(wh2, 1, 2), alpha)    # (B, 2N, 2N)
    att = jnp.where(adj[None, :, :] > 0, e, NEG_BIG)
    att = jax.nn.softmax(att, axis=1)
    # dropout(attention) is identity in eval mode
    hp = jnp.matmul(att, wh)                                       # (B, 2N, Dout)
    out = jnp.concatenate([hp[:, :N], hp[:, N:]], axis=-1)         # (B, N, 2*Dout)
    return jax.nn.elu(out) if concat else out


# ----------------------------------- main -------------------------------------

if __name__ == "__main__":
    # num_nodes=16, in_features=4, out_features=8, batch=2, alpha=0.2, concat=True
    B, N, Din, Dout = 2, 16, 4, 8
    alpha = 0.2

    key = jax.random.PRNGKey(0)
    k_h, k_ht, k_adj, k_w, k_a = jax.random.split(key, 5)

    h = jax.random.normal(k_h, (B, N, Din), jnp.float32)
    ht = jax.random.normal(k_ht, (B, N, Din), jnp.float32)

    # Base adjacency with self-loops, then the module's padded block structure:
    #   adj_full = [[A, I], [0, A]]   of shape (2N, 2N)
    A = (jax.random.uniform(k_adj, (N, N)) > 0.6).astype(jnp.float32)
    A = jnp.maximum(A, jnp.eye(N, dtype=jnp.float32))
    I = jnp.eye(N, dtype=jnp.float32)
    Z = jnp.zeros((N, N), jnp.float32)
    adj_full = jnp.block([[A, I], [Z, A]])
    # TODO(synk): the module also builds `dis` the same way but never uses it in
    # forward(), so it is omitted here.

    W = 0.4 * jax.random.normal(k_w, (Din, Dout), jnp.float32)      # xavier-like scale
    a = 0.4 * jax.random.normal(k_a, (2 * Dout, 1), jnp.float32)

    out = jax.block_until_ready(
        gat_forward_pallas(h, ht, adj_full, W, a, alpha=alpha, concat=True))
    ref = gat_ref(h, ht, adj_full, W, a, alpha, concat=True)

    assert out.shape == (B, N, 2 * Dout)
    np.testing.assert_allclose(np.asarray(out), np.asarray(ref), rtol=1e-4, atol=1e-4)
    print("KERNEL_OK")
</pallas_src>

<mosaic_0001>
module attributes {stable_mosaic.version = 11 : i64} {
  func.func @gat_kernel(%arg0: i32, %arg1: memref<1x32x4xf32, #tpu.memory_space<vmem>>, %arg2: memref<4x8xf32, #tpu.memory_space<vmem>>, %arg3: memref<1x8xf32, #tpu.memory_space<vmem>>, %arg4: memref<8x1xf32, #tpu.memory_space<vmem>>, %arg5: memref<32x32xf32, #tpu.memory_space<vmem>>, %arg6: memref<1x32x8xf32, #tpu.memory_space<vmem>>) attributes {dimension_semantics = [#tpu.dimension_semantics<parallel>], iteration_bounds = array<i64: 2>, scalar_prefetch = 0 : i64, scratch_operands = 0 : i64, tpu.core_type = #tpu.core_type<tc>, window_params = [{transform_indices = @transform_0, window_bounds = array<i64: 1, 32, 4>}, {pipeline_mode = #tpu.pipeline_mode<synchronous>, transform_indices = @transform_1, window_bounds = array<i64: 4, 8>}, {pipeline_mode = #tpu.pipeline_mode<synchronous>, transform_indices = @transform_2, window_bounds = array<i64: 1, 8>}, {pipeline_mode = #tpu.pipeline_mode<synchronous>, transform_indices = @transform_3, window_bounds = array<i64: 8, 1>}, {pipeline_mode = #tpu.pipeline_mode<synchronous>, transform_indices = @transform_4, window_bounds = array<i64: 32, 32>}, {transform_indices = @transform_5, window_bounds = array<i64: 1, 32, 8>}]} {
    %c0 = arith.constant 0 : index
    %c0_0 = arith.constant 0 : index
    %c0_1 = arith.constant 0 : index
    %0 = vector.load %arg1[%c0, %c0_0, %c0_1] : memref<1x32x4xf32, #tpu.memory_space<vmem>>, vector<1x32x4xf32>
    %1 = vector.shape_cast %0 : vector<1x32x4xf32> to vector<32x4xf32>
    %c0_2 = arith.constant 0 : index
    %c0_3 = arith.constant 0 : index
    %2 = vector.load %arg2[%c0_2, %c0_3] : memref<4x8xf32, #tpu.memory_space<vmem>>, vector<4x8xf32>
    %cst = arith.constant dense<0.000000e+00> : vector<32x8xf32>
    %3 = tpu.matmul %1, %2, %cst {dimension_numbers = #tpu.dot_dimension_numbers<[1], [0], [0], [1], [0, 0, 1, 1], [], []>} : vector<32x4xf32>, vector<4x8xf32>, vector<32x8xf32> -> vector<32x8xf32>
    %c0_4 = arith.constant 0 : index
    %c0_5 = arith.constant 0 : index
    %4 = vector.load %arg4[%c0_4, %c0_5] : memref<8x1xf32, #tpu.memory_space<vmem>>, vector<8x1xf32>
    %cst_6 = arith.constant dense<0.000000e+00> : vector<32x1xf32>
    %5 = tpu.matmul %3, %4, %cst_6 {dimension_numbers = #tpu.dot_dimension_numbers<[1], [0], [0], [1], [0, 0, 1, 1], [], []>} : vector<32x8xf32>, vector<8x1xf32>, vector<32x1xf32> -> vector<32x1xf32>
    %c0_7 = arith.constant 0 : index
    %c0_8 = arith.constant 0 : index
    %6 = vector.load %arg3[%c0_7, %c0_8] : memref<1x8xf32, #tpu.memory_space<vmem>>, vector<1x8xf32>
    %7 = tpu.transpose %3, [1, 0] : vector<32x8xf32> -> vector<8x32xf32>
    %cst_9 = arith.constant dense<0.000000e+00> : vector<1x32xf32>
    %8 = tpu.matmul %6, %7, %cst_9 {dimension_numbers = #tpu.dot_dimension_numbers<[1], [0], [0], [1], [0, 0, 1, 1], [], []>} : vector<1x8xf32>, vector<8x32xf32>, vector<1x32xf32> -> vector<1x32xf32>
    %9 = vector.broadcast %5 : vector<32x1xf32> to vector<32x32xf32>
    %10 = vector.broadcast %8 : vector<1x32xf32> to vector<32x32xf32>
    %11 = arith.addf %9, %10 : vector<32x32xf32>
    %cst_10 = arith.constant 0.000000e+00 : f32
    %12 = vector.broadcast %cst_10 : f32 to vector<32x32xf32>
    %13 = arith.cmpf ogt, %11, %12 : vector<32x32xf32>
    %cst_11 = arith.constant 2.000000e-01 : f32
    %14 = vector.broadcast %cst_11 : f32 to vector<32x32xf32>
    %15 = arith.mulf %14, %11 : vector<32x32xf32>
    %16 = arith.select %13, %11, %15 : vector<32x32xi1>, vector<32x32xf32>
    %c0_12 = arith.constant 0 : index
    %c0_13 = arith.constant 0 : index
    %17 = vector.load %arg5[%c0_12, %c0_13] : memref<32x32xf32, #tpu.memory_space<vmem>>, vector<32x32xf32>
    %cst_14 = arith.constant 0.000000e+00 : f32
    %18 = vector.broadcast %cst_14 : f32 to vector<32x32xf32>
    %19 = arith.cmpf ogt, %17, %18 : vector<32x32xf32>
    %cst_15 = arith.constant -9.000000e+15 : f32
    %20 = vector.broadcast %cst_15 : f32 to vector<32x32xf32>
    %21 = arith.select %19, %16, %20 : vector<32x32xi1>, vector<32x32xf32>
    %cst_16 = arith.constant dense<0xFF800000> : vector<32xf32>
    %22 = vector.multi_reduction <maximumf>, %21, %cst_16 [1] : vector<32x32xf32> to vector<32xf32>
    %23 = vector.shape_cast %22 : vector<32xf32> to vector<32x1xf32>
    %24 = vector.broadcast %23 : vector<32x1xf32> to vector<32x32xf32>
    %25 = arith.subf %21, %24 : vector<32x32xf32>
    %26 = math.exp %25 : vector<32x32xf32>
    %cst_17 = arith.constant dense<0.000000e+00> : vector<32xf32>
    %27 = vector.multi_reduction <add>, %26, %cst_17 [1] : vector<32x32xf32> to vector<32xf32>
    %28 = vector.shape_cast %27 : vector<32xf32> to vector<32x1xf32>
    %29 = vector.broadcast %28 : vector<32x1xf32> to vector<32x32xf32>
    %30 = arith.divf %26, %29 : vector<32x32xf32>
    %31 = tpu.transpose %30, [1, 0] : vector<32x32xf32> -> vector<32x32xf32>
    %cst_18 = arith.constant dense<0.000000e+00> : vector<32x8xf32>
    %32 = tpu.matmul %31, %3, %cst_18 {dimension_numbers = #tpu.dot_dimension_numbers<[1], [0], [0], [1], [0, 0, 1, 1], [], []>} : vector<32x32xf32>, vector<32x8xf32>, vector<32x8xf32> -> vector<32x8xf32>
    %cst_19 = arith.constant 0.000000e+00 : f32
    %33 = vector.broadcast %cst_19 : f32 to vector<32x8xf32>
    %34 = arith.cmpf ogt, %32, %33 : vector<32x8xf32>
    %cst_20 = arith.constant 0.000000e+00 : f32
    %35 = vector.broadcast %cst_20 : f32 to vector<32x8xf32>
    %36 = arith.minimumf %32, %35 : vector<32x8xf32>
    %37 = math.exp %36 : vector<32x8xf32>
    %cst_21 = arith.constant 1.000000e+00 : f32
    %38 = vector.broadcast %cst_21 : f32 to vector<32x8xf32>
    %39 = arith.subf %37, %38 : vector<32x8xf32>
    %40 = arith.select %34, %32, %39 : vector<32x8xi1>, vector<32x8xf32>
    %c0_22 = arith.constant 0 : index
    %c0_23 = arith.constant 0 : index
    %c0_24 = arith.constant 0 : index
    %41 = vector.load %arg6[%c0_22, %c0_23, %c0_24] : memref<1x32x8xf32, #tpu.memory_space<vmem>>, vector<1x32x8xf32>
    %42 = vector.shape_cast %41 : vector<1x32x8xf32> to vector<32x8xf32>
    %43 = vector.shape_cast %40 : vector<32x8xf32> to vector<1x32x8xf32>
    tpu.vector_store %arg6[%c0_22, %c0_23, %c0_24], %43 {strides = array<i32>} : memref<1x32x8xf32, #tpu.memory_space<vmem>>, vector<1x32x8xf32>,
    return
  }
  func.func @transform_0(%arg0: i32) -> (i32, i32, i32) {
    %c0_i32 = arith.constant 0 : i32
    %c0_i32_0 = arith.constant 0 : i32
    %c0_i32_1 = arith.constant 0 : i32
    return %arg0, %c0_i32, %c0_i32_0 : i32, i32, i32
  }
  func.func @transform_1(%arg0: i32) -> (i32, i32) {
    %c0_i32 = arith.constant 0 : i32
    %c0_i32_0 = arith.constant 0 : i32
    %c0_i32_1 = arith.constant 0 : i32
    return %c0_i32, %c0_i32_0 : i32, i32
  }
  func.func @transform_2(%arg0: i32) -> (i32, i32) {
    %c0_i32 = arith.constant 0 : i32
    %c0_i32_0 = arith.constant 0 : i32
    %c0_i32_1 = arith.constant 0 : i32
    return %c0_i32, %c0_i32_0 : i32, i32
  }
  func.func @transform_3(%arg0: i32) -> (i32, i32) {
    %c0_i32 = arith.constant 0 : i32
    %c0_i32_0 = arith.constant 0 : i32
    %c0_i32_1 = arith.constant 0 : i32
    return %c0_i32, %c0_i32_0 : i32, i32
  }
  func.func @transform_4(%arg0: i32) -> (i32, i32) {
    %c0_i32 = arith.constant 0 : i32
    %c0_i32_0 = arith.constant 0 : i32
    %c0_i32_1 = arith.constant 0 : i32
    return %c0_i32, %c0_i32_0 : i32, i32
  }
  func.func @transform_5(%arg0: i32) -> (i32, i32, i32) {
    %c0_i32 = arith.constant 0 : i32
    %c0_i32_0 = arith.constant 0 : i32
    %c0_i32_1 = arith.constant 0 : i32
    return %arg0, %c0_i32, %c0_i32_0 : i32, i32, i32
  }
}

</mosaic_0001>

<llo_original>
// kernel: tpu_custom_call.1
$region0: #{tpu_custom_call.1}
  #allocation0 [shape = 'u32[]', space=smem, size = 0x4, offset = 0x4, fixed_abs, tag = 'smem constant byte address 0x4 - core index']
  #allocation1 [shape = 'u32[144,128]{1,0:T(1,128)}', space=vmem, size = 0x12000, scoped, tag = 'internal scratch']
  %s0 = inlined_call_operand.vmem [shape: f32[2,32,4], index: 0, kind: input, shape index: {}]
  %s1 = inlined_call_operand.vmem [shape: f32[4,8], index: 1, kind: input, shape index: {}]
  %s2 = inlined_call_operand.vmem [shape: f32[1,8], index: 2, kind: input, shape index: {}]
  %s3 = inlined_call_operand.vmem [shape: f32[8,1], index: 3, kind: input, shape index: {}]
  %s4 = inlined_call_operand.vmem [shape: f32[32,32], index: 4, kind: input, shape index: {}]
  %s5 = inlined_call_operand.vmem [shape: f32[2,32,8], index: 5, kind: output, shape index: {}]
  %s6 = sld [smem:[#allocation0]]
  $region53: #{tpu_custom_call.1} parent=0
    _
  %s8 = ssub.s32 1, %s6
  %s9 = scalar_select 0, %s8, %s6
  loop: start=0, step=1, limit=4
  $region2: #{tpu_custom_call.1} parent=0 // loop_pre_header
    _
  $region3: #{tpu_custom_call.1} parent=0 // loop_header
    %s11 = sphi 0, %s15
    %p12 = scmp.ge.s32.totalorder %s11, 4
    %s21 = sphi 0, %s23
    %s24 = sphi 0, %s21
    %s25 = sphi 0, %s24
    %s41 = sphi 0, %s25
    %s45 = sphi 0, %s45
    %s47 = sphi 0, %s45
    %s48 = sphi 0, %s47
    %s62 = sphi 0, %s48
    %s66 = sphi 0, %s66
    %s68 = sphi 0, %s66
    %s69 = sphi 0, %s68
    %s83 = sphi 0, %s69
    %s87 = sphi 0, %s87
    %s89 = sphi 0, %s87
    %s90 = sphi 0, %s89
    %s104 = sphi 0, %s90
    %s108 = sphi 0, %s108
    %s110 = sphi 0, %s108
    %s111 = sphi 0, %s110
    %s125 = sphi 0, %s111
    %s131 = sphi 0, %s133
    %s134 = sphi 0, %s131
    %s135 = sphi 0, %s134
    %s151 = sphi 0, %s135
  $region4: #{tpu_custom_call.1} parent=0 // loop_header_branch
    %14 = sbr.rel (%p12) target = $region8
  $region5: #{tpu_custom_call.1} parent=0 // loop_body
    %s16 = ssub.s32 %s11, 1
    %s17 = ssub.s32 %s11, 2
    %s18 = sadd.s32 %s11, 1
    %s19 = ssub.s32 %s11, %s18
    %p20 = scmp.eq.s32.totalorder %s19, 0
    %s22 = sadd.s32 %s21, 1
    %s23 = scalar_select %p20, %s21, %s22
    %p26 = pneg %p20
    %p27 = scmp.eq.s32.totalorder %s11, 1
    %p28 = por %p26, %p27
    %p29 = scmp.ne.s32.totalorder %s21, %s24
    %p30 = scmp.eq.s32.totalorder %s11, 0
    %p31 = por %p29, %p30
    %p32 = scmp.ne.s32.totalorder %s21, %s24
    %p33 = scmp.eq.s32.totalorder %s16, 1
    %p34 = por %p32, %p33
    %p35 = scmp.ne.s32.totalorder %s24, %s25
    %p36 = scmp.eq.s32.totalorder %s16, 0
    %p37 = por %p35, %p36
    %p38 = scmp.ne.s32.totalorder %s24, %s25
    %p39 = scmp.eq.s32.totalorder %s17, 1
    %p40 = por %p38, %p39
    %p42 = scmp.ne.s32.totalorder %s25, %s41
    %p43 = scmp.eq.s32.totalorder %s17, 0
    %p44 = por %p42, %p43
    %s46 = sadd.s32 %s45, 1
    %p49 = scmp.eq.s32.totalorder %s11, 1
    %p50 = scmp.ne.s32.totalorder %s45, %s47
    %p51 = scmp.eq.s32.totalorder %s11, 0
    %p52 = por %p50, %p51
    %p53 = scmp.ne.s32.totalorder %s45, %s47
    %p54 = scmp.eq.s32.totalorder %s16, 1
    %p55 = por %p53, %p54
    %p56 = scmp.ne.s32.totalorder %s47, %s48
    %p57 = scmp.eq.s32.totalorder %s16, 0
    %p58 = por %p56, %p57
    %p59 = scmp.ne.s32.totalorder %s47, %s48
    %p60 = scmp.eq.s32.totalorder %s17, 1
    %p61 = por %p59, %p60
    %p63 = scmp.ne.s32.totalorder %s48, %s62
    %p64 = scmp.eq.s32.totalorder %s17, 0
    %p65 = por %p63, %p64
    %s67 = sadd.s32 %s66, 1
    %p70 = scmp.eq.s32.totalorder %s11, 1
    %p71 = scmp.ne.s32.totalorder %s66, %s68
    %p72 = scmp.eq.s32.totalorder %s11, 0
    %p73 = por %p71, %p72
    %p74 = scmp.ne.s32.totalorder %s66, %s68
    %p75 = scmp.eq.s32.totalorder %s16, 1
    %p76 = por %p74, %p75
    %p77 = scmp.ne.s32.totalorder %s68, %s69
    %p78 = scmp.eq.s32.totalorder %s16, 0
    %p79 = por %p77, %p78
    %p80 = scmp.ne.s32.totalorder %s68, %s69
    %p81 = scmp.eq.s32.totalorder %s17, 1
    %p82 = por %p80, %p81
    %p84 = scmp.ne.s32.totalorder %s69, %s83
    %p85 = scmp.eq.s32.totalorder %s17, 0
    %p86 = por %p84, %p85
    %s88 = sadd.s32 %s87, 1
    %p91 = scmp.eq.s32.totalorder %s11, 1
    %p92 = scmp.ne.s32.totalorder %s87, %s89
    %p93 = scmp.eq.s32.totalorder %s11, 0
    %p94 = por %p92, %p93
    %p95 = scmp.ne.s32.totalorder %s87, %s89
    %p96 = scmp.eq.s32.totalorder %s16, 1
    %p97 = por %p95, %p96
    %p98 = scmp.ne.s32.totalorder %s89, %s90
    %p99 = scmp.eq.s32.totalorder %s16, 0
    %p100 = por %p98, %p99
    %p101 = scmp.ne.s32.totalorder %s89, %s90
    %p102 = scmp.eq.s32.totalorder %s17, 1
    %p103 = por %p101, %p102
    %p105 = scmp.ne.s32.totalorder %s90, %s104
    %p106 = scmp.eq.s32.totalorder %s17, 0
    %p107 = por %p105, %p106
    %s109 = sadd.s32 %s108, 1
    %p112 = scmp.eq.s32.totalorder %s11, 1
    %p113 = scmp.ne.s32.totalorder %s108, %s110
    %p114 = scmp.eq.s32.totalorder %s11, 0
    %p115 = por %p113, %p114
    %p116 = scmp.ne.s32.totalorder %s108, %s110
    %p117 = scmp.eq.s32.totalorder %s16, 1
    %p118 = por %p116, %p117
    %p119 = scmp.ne.s32.totalorder %s110, %s111
    %p120 = scmp.eq.s32.totalorder %s16, 0
    %p121 = por %p119, %p120
    %p122 = scmp.ne.s32.totalorder %s110, %s111
    %p123 = scmp.eq.s32.totalorder %s17, 1
    %p124 = por %p122, %p123
    %p126 = scmp.ne.s32.totalorder %s111, %s125
    %p127 = scmp.eq.s32.totalorder %s17, 0
    %p128 = por %p126, %p127
    %s129 = ssub.s32 %s11, %s18
    %p130 = scmp.eq.s32.totalorder %s129, 0
    %s132 = sadd.s32 %s131, 1
    %s133 = scalar_select %p130, %s131, %s132
    %p136 = pneg %p130
    %p137 = scmp.eq.s32.totalorder %s11, 1
    %p138 = por %p136, %p137
    %p139 = scmp.ne.s32.totalorder %s131, %s134
    %p140 = scmp.eq.s32.totalorder %s11, 0
    %p141 = por %p139, %p140
    %p142 = scmp.ne.s32.totalorder %s131, %s134
    %p143 = scmp.eq.s32.totalorder %s16, 1
    %p144 = por %p142, %p143
    %p145 = scmp.ne.s32.totalorder %s134, %s135
    %p146 = scmp.eq.s32.totalorder %s16, 0
    %p147 = por %p145, %p146
    %p148 = scmp.ne.s32.totalorder %s134, %s135
    %p149 = scmp.eq.s32.totalorder %s17, 1
    %p150 = por %p148, %p149
    %p152 = scmp.ne.s32.totalorder %s135, %s151
    %p153 = scmp.eq.s32.totalorder %s17, 0
    %p154 = por %p152, %p153
    %p155 = scmp.le.s32.totalorder 1, %s11
    %p156 = scmp.lt.s32.totalorder %s11, 3
    %p157 = pnand %p155, %p156
    %p158 = pneg %p157
    // Predicated region
    $region9: #{tpu_custom_call.1} parent=5 // pred_check
      _
    $region10: #{tpu_custom_call.1} parent=5 // pred_check_branch
      %160 = sbr.rel (%p157) target = $region12
    $region11: #{tpu_custom_call.1} parent=5 // pred_region
      %s161 = ssub.s32 %s11, 1
      // Predicated region
      $region13: #{tpu_custom_call.1} parent=11 // pred_check
        %p162 = pneg %p58
      $region14: #{tpu_custom_call.1} parent=11 // pred_check_branch
        %164 = sbr.rel (%p162) target = $region16
      $region15: #{tpu_custom_call.1} parent=11 // pred_region
        _
      $region16: #{tpu_custom_call.1} parent=11 // pred_fallthru
        _
      // Predicated region
      $region17: #{tpu_custom_call.1} parent=11 // pred_check
        %p165 = pneg %p79
      $region18: #{tpu_custom_call.1} parent=11 // pred_check_branch
        %167 = sbr.rel (%p165) target = $region20
      $region19: #{tpu_custom_call.1} parent=11 // pred_region
        _
      $region20: #{tpu_custom_call.1} parent=11 // pred_fallthru
        _
      // Predicated region
      $region21: #{tpu_custom_call.1} parent=11 // pred_check
        %p168 = pneg %p100
      $region22: #{tpu_custom_call.1} parent=11 // pred_check_branch
        %170 = sbr.rel (%p168) target = $region24
      $region23: #{tpu_custom_call.1} parent=11 // pred_region
        _
      $region24: #{tpu_custom_call.1} parent=11 // pred_fallthru
        _
      // Predicated region
      $region25: #{tpu_custom_call.1} parent=11 // pred_check
        %p171 = pneg %p121
      $region26: #{tpu_custom_call.1} parent=11 // pred_check_branch
        %173 = sbr.rel (%p171) target = $region28
      $region27: #{tpu_custom_call.1} parent=11 // pred_region
        _
      $region28: #{tpu_custom_call.1} parent=11 // pred_fallthru
        _
    $region12: #{tpu_custom_call.1} parent=5 // pred_fallthru
      _
    %p174 = scmp.lt.s32.totalorder %s11, 2
    // Predicated region
    $region29: #{tpu_custom_call.1} parent=5 // pred_check
      %p175 = pneg %p174
    $region30: #{tpu_custom_call.1} parent=5 // pred_check_branch
      %177 = sbr.rel (%p175) target = $region32
    $region31: #{tpu_custom_call.1} parent=5 // pred_region
      // Predicated region
      $region33: #{tpu_custom_call.1} parent=31 // pred_check
        %p178 = pneg %p31
      $region34: #{tpu_custom_call.1} parent=31 // pred_check_branch
        %180 = sbr.rel (%p178) target = $region36
      $region35: #{tpu_custom_call.1} parent=31 // pred_region
        %p181 = scmp.lt.s32.totalorder %s11, 1
        %s182 = scalar_select %p181, %s11, 1
        %s183 = smul.addr %s182, 4
        %s184 = smul.addr %s183, 8
        %s185 = scalar_lea.vmem %s0, %s184
      $region36: #{tpu_custom_call.1} parent=31 // pred_fallthru
        _
    $region32: #{tpu_custom_call.1} parent=5 // pred_fallthru
      _
    %p186 = scmp.le.s32.totalorder 1, %s11
    %p187 = scmp.lt.s32.totalorder %s11, 3
    %p188 = pnand %p186, %p187
    %p189 = pneg %p188
    // Predicated region
    $region37: #{tpu_custom_call.1} parent=5 // pred_check
      _
    $region38: #{tpu_custom_call.1} parent=5 // pred_check_branch
      %191 = sbr.rel (%p188) target = $region40
    $region39: #{tpu_custom_call.1} parent=5 // pred_region
      %s192 = ssub.s32 %s11, 1
      %p193 = scmp.lt.s32.totalorder %s16, 1
      %s194 = scalar_select %p193, %s16, 1
      %s195 = smul.addr %s194, 4
      %s196 = smul.addr %s195, 8
      %s197 = scalar_lea.vmem %s0, %s196
      %p198 = pneg %p37
      %p199 = pneg %p34
      %p200 = pneg %p58
      %p201 = pneg %p55
      %p202 = pneg %p79
      %p203 = pneg %p76
      %p204 = pneg %p100
      %p205 = pneg %p97
      %p206 = pneg %p121
      %p207 = pneg %p118
      %p208 = pneg %p147
      %p209 = pneg %p144
      %p210 = scmp.lt.s32.totalorder %s16, 1
      %s211 = scalar_select %p210, %s16, 1
      %s212 = smul.addr %s211, 4
      %s213 = smul.addr %s212, 8
      %s214 = scalar_lea.vmem %s5, %s213
      %p215 = scmp.lt.s32.totalorder %s16, 1
      %s216 = scalar_select %p215, %s16, 1
      %s217 = smul.addr %s216, 4
      %s218 = smul.addr %s217, 8
      %s219 = scalar_lea.vmem %s0, %s218
      %p220 = scmp.lt.s32.totalorder %s16, 1
      %s221 = scalar_select %p220, %s16, 1
      %s222 = smul.addr %s221, 4
      %s223 = smul.addr %s222, 8
      %s224 = scalar_lea.vmem %s5, %s223
      %v225 = vld [vmem:[%s219] sm:$0xff]
      %v226 = vld [vmem:[%s219 + $0x8] sm:$0xff]
      %v227 = vld [vmem:[%s219 + $0x10] sm:$0xff]
      %v228 = vld [vmem:[%s219 + $0x18] sm:$0xff]
      %v229 = vld [vmem:[%s1] sm:$0xf]
      %vm230 = vcmask 31744
      %v232 = vsel %vm230, %v225, 0
      %v235 = vsel %vm230, %v226, 0
      %v238 = vsel %vm230, %v227, 0
      %v241 = vsel %vm230, %v228, 0
      %vm243 = vcmask 1043456
      %v245 = vsel %vm243, %v229, 0
      %247 = vmatprep.subr.mxu0 0.0
      %248 = vmatpush1.msra.mxu0 %v245
      %249 = vmatprep.subr.mxu0 0.0
      %250 = vmatpush1.msra.mxu0 0.0
      %251 = vmatprep.subr.mxu0 0.0
      %252 = vmatpush1.msra.mxu0 0.0
      %253 = vmatprep.subr.mxu0 0.0
      %254 = vmatpush1.msra.mxu0 0.0
      %255 = vmatprep.subr.mxu0 0.0
      %256 = vmatpush1.msra.mxu0 0.0
      %257 = vmatprep.subr.mxu0 0.0
      %258 = vmatpush1.msra.mxu0 0.0
      %259 = vmatprep.subr.mxu0 0.0
      %260 = vmatpush1.msra.mxu0 0.0
      %261 = vmatprep.subr.mxu0 0.0
      %262 = vmatpush1.msra.mxu0 0.0
      %263 = vmatprep.subr.mxu0 0.0
      %264 = vmatpush1.msra.mxu0 0.0
      %265 = vmatprep.subr.mxu0 0.0
      %266 = vmatpush1.msra.mxu0 0.0
      %267 = vmatprep.subr.mxu0 0.0
      %268 = vmatpush1.msra.mxu0 0.0
      %269 = vmatprep.subr.mxu0 0.0
      %270 = vmatpush1.msra.mxu0 0.0
      %271 = vmatprep.subr.mxu0 0.0
      %272 = vmatpush1.msra.mxu0 0.0
      %273 = vmatprep.subr.mxu0 0.0
      %274 = vmatpush1.msra.mxu0 0.0
      %275 = vmatprep.subr.mxu0 0.0
      %276 = vmatpush1.msra.mxu0 0.0
      %277 = vmatprep.subr.mxu0 0.0
      %278 = vmatpush1.msra.mxu0 0.0
      %279 = vmatprep.subr.mxu0 0.0
      %280 = vmatpush1.msra.mxu0 0.0
      %281 = vmatprep.subr.mxu0 0.0
      %282 = vmatpush1.msra.mxu0 0.0
      %283 = vmatprep.subr.mxu0 0.0
      %284 = vmatpush1.msra.mxu0 0.0
      %285 = vmatprep.subr.mxu0 0.0
      %286 = vmatpush1.msra.mxu0 0.0
      %287 = vmatprep.subr.mxu0 0.0
      %288 = vmatpush1.msra.mxu0 0.0
      %289 = vmatprep.subr.mxu0 0.0
      %290 = vmatpush1.msra.mxu0 0.0
      %291 = vmatprep.subr.mxu0 0.0
      %292 = vmatpush1.msra.mxu0 0.0
      %293 = vmatprep.subr.mxu0 0.0
      %294 = vmatpush1.msra.mxu0 0.0
      %295 = vmatprep.subr.mxu0 0.0
      %296 = vmatpush1.msra.mxu0 0.0
      %297 = vmatprep.subr.mxu0 0.0
      %298 = vmatpush1.msra.mxu0 0.0
      %299 = vmatprep.subr.mxu0 0.0
      %300 = vmatpush1.msra.mxu0 0.0
      %301 = vmatprep.subr.mxu0 0.0
      %302 = vmatpush1.msra.mxu0 0.0
      %303 = vmatprep.subr.mxu0 0.0
      %304 = vmatpush1.msra.mxu0 0.0
      %305 = vmatprep.subr.mxu0 0.0
      %306 = vmatpush1.msra.mxu0 0.0
      %307 = vmatprep.subr.mxu0 0.0
      %308 = vmatpush1.msra.mxu0 0.0
      %309 = vmatprep.subr.mxu0 0.0
      %310 = vmatpush1.msra.mxu0 0.0
      %311 = vmatprep.mubr.f32.mxu0 0.0
      %312 = vmatmul.mubr.f32.gmra.mrb[0].mxu0 %v232
      %v313 = vpop.f32.mrb[0].mxu0
      %v314 = vadd.f32 0.0, %v313
      %v315 = vpop.f32.mrb[0].mxu0
      %316 = vmatprep.mubr.f32.mxu0 0.0
      %317 = vmatmul.mubr.f32.gmra.mrb[0].mxu0 %v235
      %v318 = vpop.f32.mrb[0].mxu0
      %v319 = vadd.f32 0.0, %v318
      %v320 = vpop.f32.mrb[0].mxu0
      %321 = vmatprep.mubr.f32.mxu0 0.0
      %322 = vmatmul.mubr.f32.gmra.mrb[0].mxu0 %v238
      %v323 = vpop.f32.mrb[0].mxu0
      %v324 = vadd.f32 0.0, %v323
      %v325 = vpop.f32.mrb[0].mxu0
      %326 = vmatprep.mubr.f32.mxu0 0.0
      %327 = vmatmul.mubr.f32.gmra.mrb[0].mxu0 %v241
      %v328 = vpop.f32.mrb[0].mxu0
      %v329 = vadd.f32 0.0, %v328
      %v330 = vpop.f32.mrb[0].mxu0
      %331 = vdwg.mxu0
      %v332 = vld [vmem:[%s3] sm:$0xff]
      %vm333 = vcmask 64512
      %v335 = vsel %vm333, %v314, 0
      %v338 = vsel %vm333, %v319, 0
      %v341 = vsel %vm333, %v324, 0
      %v344 = vsel %vm333, %v329, 0
      %346 = vmatprep.subr.mxu0 0.0
      %347 = vmatpush1.msra.mxu0 %v332
      %348 = vmatprep.subr.mxu0 0.0
      %349 = vmatpush1.msra.mxu0 0.0
      %350 = vmatprep.subr.mxu0 0.0
      %351 = vmatpush1.msra.mxu0 0.0
      %352 = vmatprep.subr.mxu0 0.0
      %353 = vmatpush1.msra.mxu0 0.0
      %354 = vmatprep.subr.mxu0 0.0
      %355 = vmatpush1.msra.mxu0 0.0
      %356 = vmatprep.subr.mxu0 0.0
      %357 = vmatpush1.msra.mxu0 0.0
      %358 = vmatprep.subr.mxu0 0.0
      %359 = vmatpush1.msra.mxu0 0.0
      %360 = vmatprep.subr.mxu0 0.0
      %361 = vmatpush1.msra.mxu0 0.0
      %362 = vmatprep.subr.mxu0 0.0
      %363 = vmatpush1.msra.mxu0 0.0
      %364 = vmatprep.subr.mxu0 0.0
      %365 = vmatpush1.msra.mxu0 0.0
      %366 = vmatprep.subr.mxu0 0.0
      %367 = vmatpush1.msra.mxu0 0.0
      %368 = vmatprep.subr.mxu0 0.0
      %369 = vmatpush1.msra.mxu0 0.0
      %370 = vmatprep.subr.mxu0 0.0
      %371 = vmatpush1.msra.mxu0 0.0
      %372 = vmatprep.subr.mxu0 0.0
      %373 = vmatpush1.msra.mxu0 0.0
      %374 = vmatprep.subr.mxu0 0.0
      %375 = vmatpush1.msra.mxu0 0.0
      %376 = vmatprep.subr.mxu0 0.0
      %377 = vmatpush1.msra.mxu0 0.0
      %378 = vmatprep.subr.mxu0 0.0
      %379 = vmatpush1.msra.mxu0 0.0
      %380 = vmatprep.subr.mxu0 0.0
      %381 = vmatpush1.msra.mxu0 0.0
      %382 = vmatprep.subr.mxu0 0.0
      %383 = vmatpush1.msra.mxu0 0.0
      %384 = vmatprep.subr.mxu0 0.0
      %385 = vmatpush1.msra.mxu0 0.0
      %386 = vmatprep.subr.mxu0 0.0
      %387 = vmatpush1.msra.mxu0 0.0
      %388 = vmatprep.subr.mxu0 0.0
      %389 = vmatpush1.msra.mxu0 0.0
      %390 = vmatprep.subr.mxu0 0.0
      %391 = vmatpush1.msra.mxu0 0.0
      %392 = vmatprep.subr.mxu0 0.0
      %393 = vmatpush1.msra.mxu0 0.0
      %394 = vmatprep.subr.mxu0 0.0
      %395 = vmatpush1.msra.mxu0 0.0
      %396 = vmatprep.subr.mxu0 0.0
      %397 = vmatpush1.msra.mxu0 0.0
      %398 = vmatprep.subr.mxu0 0.0
      %399 = vmatpush1.msra.mxu0 0.0
      %400 = vmatprep.subr.mxu0 0.0
      %401 = vmatpush1.msra.mxu0 0.0
      %402 = vmatprep.subr.mxu0 0.0
      %403 = vmatpush1.msra.mxu0 0.0
      %404 = vmatprep.subr.mxu0 0.0
      %405 = vmatpush1.msra.mxu0 0.0
      %406 = vmatprep.subr.mxu0 0.0
      %407 = vmatpush1.msra.mxu0 0.0
      %408 = vmatprep.subr.mxu0 0.0
      %409 = vmatpush1.msra.mxu0 0.0
      %410 = vmatprep.mubr.f32.mxu0 0.0
      %411 = vmatmul.mubr.f32.gmra.mrb[0].mxu0 %v335
      %v412 = vpop.f32.mrb[0].mxu0
      %v413 = vadd.f32 0.0, %v412
      %v414 = vpop.f32.mrb[0].mxu0
      %415 = vmatprep.mubr.f32.mxu0 0.0
      %416 = vmatmul.mubr.f32.gmra.mrb[0].mxu0 %v338
      %v417 = vpop.f32.mrb[0].mxu0
      %v418 = vadd.f32 0.0, %v417
      %v419 = vpop.f32.mrb[0].mxu0
      %420 = vmatprep.mubr.f32.mxu0 0.0
      %421 = vmatmul.mubr.f32.gmra.mrb[0].mxu0 %v341
      %v422 = vpop.f32.mrb[0].mxu0
      %v423 = vadd.f32 0.0, %v422
      %v424 = vpop.f32.mrb[0].mxu0
      %425 = vmatprep.mubr.f32.mxu0 0.0
      %426 = vmatmul.mubr.f32.gmra.mrb[0].mxu0 %v344
      %v427 = vpop.f32.mrb[0].mxu0
      %v428 = vadd.f32 0.0, %v427
      %v429 = vpop.f32.mrb[0].mxu0
      %430 = vdwg.mxu0
      %v431 = vld [vmem:[%s2] sm:$0x1]
      %v433 = vsel %vm333, %v431, 0
      %435 = vmatprep.subr.mxu0 0.0
      %436 = vmatpush1.xpose.msra.mxu0 %v335
      %437 = vmatprep.subr.mxu0 0.0
      %438 = vmatpush1.xpose.msra.mxu0 %v338
      %439 = vmatprep.subr.mxu0 0.0
      %440 = vmatpush1.xpose.msra.mxu0 %v341
      %441 = vmatprep.subr.mxu0 0.0
      %442 = vmatpush1.xpose.msra.mxu0 %v344
      %443 = vmatprep.subr.mxu0 0.0
      %444 = vmatpush1.xpose.msra.mxu0 0.0
      %445 = vmatprep.subr.mxu0 0.0
      %446 = vmatpush1.xpose.msra.mxu0 0.0
      %447 = vmatprep.subr.mxu0 0.0
      %448 = vmatpush1.xpose.msra.mxu0 0.0
      %449 = vmatprep.subr.mxu0 0.0
      %450 = vmatpush1.xpose.msra.mxu0 0.0
      %451 = vmatprep.subr.mxu0 0.0
      %452 = vmatpush1.xpose.msra.mxu0 0.0
      %453 = vmatprep.subr.mxu0 0.0
      %454 = vmatpush1.xpose.msra.mxu0 0.0
      %455 = vmatprep.subr.mxu0 0.0
      %456 = vmatpush1.xpose.msra.mxu0 0.0
      %457 = vmatprep.subr.mxu0 0.0
      %458 = vmatpush1.xpose.msra.mxu0 0.0
      %459 = vmatprep.subr.mxu0 0.0
      %460 = vmatpush1.xpose.msra.mxu0 0.0
      %461 = vmatprep.subr.mxu0 0.0
      %462 = vmatpush1.xpose.msra.mxu0 0.0
      %463 = vmatprep.subr.mxu0 0.0
      %464 = vmatpush1.xpose.msra.mxu0 0.0
      %465 = vmatprep.subr.mxu0 0.0
      %466 = vmatpush1.xpose.msra.mxu0 0.0
      %467 = vmatprep.subr.mxu0 0.0
      %468 = vmatpush1.xpose.msra.mxu0 0.0
      %469 = vmatprep.subr.mxu0 0.0
      %470 = vmatpush1.xpose.msra.mxu0 0.0
      %471 = vmatprep.subr.mxu0 0.0
      %472 = vmatpush1.xpose.msra.mxu0 0.0
      %473 = vmatprep.subr.mxu0 0.0
      %474 = vmatpush1.xpose.msra.mxu0 0.0
      %475 = vmatprep.subr.mxu0 0.0
      %476 = vmatpush1.xpose.msra.mxu0 0.0
      %477 = vmatprep.subr.mxu0 0.0
      %478 = vmatpush1.xpose.msra.mxu0 0.0
      %479 = vmatprep.subr.mxu0 0.0
      %480 = vmatpush1.xpose.msra.mxu0 0.0
      %481 = vmatprep.subr.mxu0 0.0
      %482 = vmatpush1.xpose.msra.mxu0 0.0
      %483 = vmatprep.subr.mxu0 0.0
      %484 = vmatpush1.xpose.msra.mxu0 0.0
      %485 = vmatprep.subr.mxu0 0.0
      %486 = vmatpush1.xpose.msra.mxu0 0.0
      %487 = vmatprep.subr.mxu0 0.0
      %488 = vmatpush1.xpose.msra.mxu0 0.0
      %489 = vmatprep.subr.mxu0 0.0
      %490 = vmatpush1.xpose.msra.mxu0 0.0
      %491 = vmatprep.subr.mxu0 0.0
      %492 = vmatpush1.xpose.msra.mxu0 0.0
      %493 = vmatprep.subr.mxu0 0.0
      %494 = vmatpush1.xpose.msra.mxu0 0.0
      %495 = vmatprep.subr.mxu0 0.0
      %496 = vmatpush1.xpose.msra.mxu0 0.0
      %497 = vmatprep.subr.mxu0 0.0
      %498 = vmatpush1.xpose.msra.mxu0 0.0
      %499 = vmatprep.mubr.f32.mxu0 0.0
      %500 = vmatmul.mubr.f32.gmra.mrb[0].mxu0 %v433
      %v501 = vpop.f32.mrb[0].mxu0
      %v502 = vadd.f32 0.0, %v501
      %v503 = vpop.f32.mrb[0].mxu0
      %504 = vdwg.mxu0
      %506 = vset.pattern.permute.xlu0 0
      %507 = vperm.xlu0 %506, %v413
      %v508 = vpop.permute.xlu0 %507
      %511 = vset.pattern.permute.xlu0 0
      %512 = vperm.xlu0 %511, %v418
      %v513 = vpop.permute.xlu0 %512
      %516 = vset.pattern.permute.xlu0 0
      %517 = vperm.xlu0 %516, %v423
      %v518 = vpop.permute.xlu0 %517
      %521 = vset.pattern.permute.xlu0 0
      %522 = vperm.xlu0 %521, %v428
      %v523 = vpop.permute.xlu0 %522
      %v525 = vlaneseq
      %v526 = vshrl.u32 %v525, 7
      %v527 = vsub.s32 0, %v526
      %v528 = vrot.slane %v502, %v527
      %v529 = vadd.f32 %v508, %v528
      %v530 = vadd.f32 %v513, %v528
      %v531 = vadd.f32 %v518, %v528
      %v532 = vadd.f32 %v523, %v528
      %vm533 = vcmp.gt.f32.partialorder %v529, 0.0
      %vm534 = vcmp.gt.f32.partialorder %v530, 0.0
      %vm535 = vcmp.gt.f32.partialorder %v531, 0.0
      %vm536 = vcmp.gt.f32.partialorder %v532, 0.0
      %v537 = vmul.f32 %v529, 0.2
      %v538 = vmul.f32 %v530, 0.2
      %v539 = vmul.f32 %v531, 0.2
      %v540 = vmul.f32 %v532, 0.2
      %v541 = vsel %vm533, %v529, %v537
      %v542 = vsel %vm534, %v530, %v538
      %v543 = vsel %vm535, %v531, %v539
      %v544 = vsel %vm536, %v532, %v540
      %v545 = vld [vmem:[%s4] sm:$0xff]
      %v546 = vld [vmem:[%s4 + $0x8] sm:$0xff]
      %v547 = vld [vmem:[%s4 + $0x10] sm:$0xff]
      %v548 = vld [vmem:[%s4 + $0x18] sm:$0xff]
      %vm549 = vcmp.gt.f32.partialorder %v545, 0.0
      %vm550 = vcmp.gt.f32.partialorder %v546, 0.0
      %vm551 = vcmp.gt.f32.partialorder %v547, 0.0
      %vm552 = vcmp.gt.f32.partialorder %v548, 0.0
      %v553 = vsel %vm549, %v541, -9e+15
      %v554 = vsel %vm550, %v542, -9e+15
      %v555 = vsel %vm551, %v543, -9e+15
      %v556 = vsel %vm552, %v544, -9e+15
      %vm557 = vcmask 261120
      %v558 = vsel %vm557, %v553, -inf
      %559 = vmax.xlane.f32.xlu0 %v558
      %v560 = vpop.xlane.xlu0 %559
      %v561 = vsel %vm557, %v554, -inf
      %562 = vmax.xlane.f32.xlu0 %v561
      %v563 = vpop.xlane.xlu0 %562
      %v564 = vsel %vm557, %v555, -inf
      %565 = vmax.xlane.f32.xlu0 %v564
      %v566 = vpop.xlane.xlu0 %565
      %v567 = vsel %vm557, %v556, -inf
      %568 = vmax.xlane.f32.xlu0 %v567
      %v569 = vpop.xlane.xlu0 %568
      %v570 = vsub.f32 %v553, %v560
      %v571 = vsub.f32 %v554, %v563
      %v572 = vsub.f32 %v555, %v566
      %v573 = vsub.f32 %v556, %v569
      %v574 = vmul.f32 %v570, 1.442695
      %v575 = vpow.pop %v574
      %v576 = vmul.f32 %v571, 1.442695
      %v577 = vpow.pop %v576
      %v578 = vmul.f32 %v572, 1.442695
      %v579 = vpow.pop %v578
      %v580 = vmul.f32 %v573, 1.442695
      %v581 = vpow.pop %v580
      %v582 = vsel %vm557, %v575, 0.0
      %583 = vadd.xlane.f32.xlu0 %v582
      %v584 = vpop.xlane.xlu0 %583
      %v585 = vsel %vm557, %v577, 0.0
      %586 = vadd.xlane.f32.xlu0 %v585
      %v587 = vpop.xlane.xlu0 %586
      %v588 = vsel %vm557, %v579, 0.0
      %589 = vadd.xlane.f32.xlu0 %v588
      %v590 = vpop.xlane.xlu0 %589
      %v591 = vsel %vm557, %v581, 0.0
      %592 = vadd.xlane.f32.xlu0 %v591
      %v593 = vpop.xlane.xlu0 %592
      %v594 = vrcp.pop %v584
      %v595 = vmul.f32 %v575, %v594
      %v596 = vrcp.pop %v587
      %v597 = vmul.f32 %v577, %v596
      %v598 = vrcp.pop %v590
      %v599 = vmul.f32 %v579, %v598
      %v600 = vrcp.pop %v593
      %v601 = vmul.f32 %v581, %v600
      %602 = vxpose.xlu0.b32.start [1/16] %v595, 128
      %603 = vxpose.xlu0.b32.cont [2/16] %v597, 128
      %604 = vxpose.xlu0.b32.cont [3/16] %v599, 128
      %605 = vxpose.xlu0.b32.cont [4/16] %v601, 128
      %606 = vxpose.xlu0.b32.cont [5/16] 0.0, 128
      %607 = vxpose.xlu0.b32.cont [6/16] 0.0, 128
      %608 = vxpose.xlu0.b32.cont [7/16] 0.0, 128
      %609 = vxpose.xlu0.b32.cont [8/16] 0.0, 128
      %610 = vxpose.xlu0.b32.cont [9/16] 0.0, 128
      %611 = vxpose.xlu0.b32.cont [10/16] 0.0, 128
      %612 = vxpose.xlu0.b32.cont [11/16] 0.0, 128
      %613 = vxpose.xlu0.b32.cont [12/16] 0.0, 128
      %614 = vxpose.xlu0.b32.cont [13/16] 0.0, 128
      %615 = vxpose.xlu0.b32.cont [14/16] 0.0, 128
      %616 = vxpose.xlu0.b32.cont [15/16] 0.0, 128
      %617 = vxpose.xlu0.b32.end [16/16] 0.0, 128
      %v618 = vpop.trf.xlu0
      %v619 = vpop.trf.xlu0
      %v620 = vpop.trf.xlu0
      %v621 = vpop.trf.xlu0
      %v622 = vpop.trf.xlu0
      %v623 = vpop.trf.xlu0
      %v624 = vpop.trf.xlu0
      %v625 = vpop.trf.xlu0
      %v626 = vpop.trf.xlu0
      %v627 = vpop.trf.xlu0
      %v628 = vpop.trf.xlu0
      %v629 = vpop.trf.xlu0
      %v630 = vpop.trf.xlu0
      %v631 = vpop.trf.xlu0
      %v632 = vpop.trf.xlu0
      %v633 = vpop.trf.xlu0
      %v635 = vsel %vm557, %v618, 0
      %v638 = vsel %vm557, %v619, 0
      %v641 = vsel %vm557, %v620, 0
      %v644 = vsel %vm557, %v621, 0
      %646 = vmatprep.subr.mxu0 0.0
      %647 = vmatpush1.msra.mxu0 %v314
      %648 = vmatprep.subr.mxu0 0.0
      %649 = vmatpush1.msra.mxu0 %v319
      %650 = vmatprep.subr.mxu0 0.0
      %651 = vmatpush1.msra.mxu0 %v324
      %652 = vmatprep.subr.mxu0 0.0
      %653 = vmatpush1.msra.mxu0 %v329
      %654 = vmatprep.subr.mxu0 0.0
      %655 = vmatpush1.msra.mxu0 0.0
      %656 = vmatprep.subr.mxu0 0.0
      %657 = vmatpush1.msra.mxu0 0.0
      %658 = vmatprep.subr.mxu0 0.0
      %659 = vmatpush1.msra.mxu0 0.0
      %660 = vmatprep.subr.mxu0 0.0
      %661 = vmatpush1.msra.mxu0 0.0
      %662 = vmatprep.subr.mxu0 0.0
      %663 = vmatpush1.msra.mxu0 0.0
      %664 = vmatprep.subr.mxu0 0.0
      %665 = vmatpush1.msra.mxu0 0.0
      %666 = vmatprep.subr.mxu0 0.0
      %667 = vmatpush1.msra.mxu0 0.0
      %668 = vmatprep.subr.mxu0 0.0
      %669 = vmatpush1.msra.mxu0 0.0
      %670 = vmatprep.subr.mxu0 0.0
      %671 = vmatpush1.msra.mxu0 0.0
      %672 = vmatprep.subr.mxu0 0.0
      %673 = vmatpush1.msra.mxu0 0.0
      %674 = vmatprep.subr.mxu0 0.0
      %675 = vmatpush1.msra.mxu0 0.0
      %676 = vmatprep.subr.mxu0 0.0
      %677 = vmatpush1.msra.mxu0 0.0
      %678 = vmatprep.subr.mxu0 0.0
      %679 = vmatpush1.msra.mxu0 0.0
      %680 = vmatprep.subr.mxu0 0.0
      %681 = vmatpush1.msra.mxu0 0.0
      %682 = vmatprep.subr.mxu0 0.0
      %683 = vmatpush1.msra.mxu0 0.0
      %684 = vmatprep.subr.mxu0 0.0
      %685 = vmatpush1.msra.mxu0 0.0
      %686 = vmatprep.subr.mxu0 0.0
      %687 = vmatpush1.msra.mxu0 0.0
      %688 = vmatprep.subr.mxu0 0.0
      %689 = vmatpush1.msra.mxu0 0.0
      %690 = vmatprep.subr.mxu0 0.0
      %691 = vmatpush1.msra.mxu0 0.0
      %692 = vmatprep.subr.mxu0 0.0
      %693 = vmatpush1.msra.mxu0 0.0
      %694 = vmatprep.subr.mxu0 0.0
      %695 = vmatpush1.msra.mxu0 0.0
      %696 = vmatprep.subr.mxu0 0.0
      %697 = vmatpush1.msra.mxu0 0.0
      %698 = vmatprep.subr.mxu0 0.0
      %699 = vmatpush1.msra.mxu0 0.0
      %700 = vmatprep.subr.mxu0 0.0
      %701 = vmatpush1.msra.mxu0 0.0
      %702 = vmatprep.subr.mxu0 0.0
      %703 = vmatpush1.msra.mxu0 0.0
      %704 = vmatprep.subr.mxu0 0.0
      %705 = vmatpush1.msra.mxu0 0.0
      %706 = vmatprep.subr.mxu0 0.0
      %707 = vmatpush1.msra.mxu0 0.0
      %708 = vmatprep.subr.mxu0 0.0
      %709 = vmatpush1.msra.mxu0 0.0
      %710 = vmatprep.mubr.f32.mxu0 0.0
      %711 = vmatmul.mubr.f32.gmra.mrb[0].mxu0 %v635
      %v712 = vpop.f32.mrb[0].mxu0
      %v713 = vadd.f32 0.0, %v712
      %v714 = vpop.f32.mrb[0].mxu0
      %715 = vmatprep.mubr.f32.mxu0 0.0
      %716 = vmatmul.mubr.f32.gmra.mrb[0].mxu0 %v638
      %v717 = vpop.f32.mrb[0].mxu0
      %v718 = vadd.f32 0.0, %v717
      %v719 = vpop.f32.mrb[0].mxu0
      %720 = vmatprep.mubr.f32.mxu0 0.0
      %721 = vmatmul.mubr.f32.gmra.mrb[0].mxu0 %v641
      %v722 = vpop.f32.mrb[0].mxu0
      %v723 = vadd.f32 0.0, %v722
      %v724 = vpop.f32.mrb[0].mxu0
      %725 = vmatprep.mubr.f32.mxu0 0.0
      %726 = vmatmul.mubr.f32.gmra.mrb[0].mxu0 %v644
      %v727 = vpop.f32.mrb[0].mxu0
      %v728 = vadd.f32 0.0, %v727
      %v729 = vpop.f32.mrb[0].mxu0
      %730 = vdwg.mxu0
      %vm731 = vcmp.gt.f32.partialorder %v713, 0.0
      %vm732 = vcmp.gt.f32.partialorder %v718, 0.0
      %vm733 = vcmp.gt.f32.partialorder %v723, 0.0
      %vm734 = vcmp.gt.f32.partialorder %v728, 0.0
      %v735 = vmin.f32 %v713, 0.0
      %v736 = vmin.f32 %v718, 0.0
      %v737 = vmin.f32 %v723, 0.0
      %v738 = vmin.f32 %v728, 0.0
      %v739 = vmul.f32 %v735, 1.442695
      %v740 = vpow.pop %v739
      %v741 = vmul.f32 %v736, 1.442695
      %v742 = vpow.pop %v741
      %v743 = vmul.f32 %v737, 1.442695
      %v744 = vpow.pop %v743
      %v745 = vmul.f32 %v738, 1.442695
      %v746 = vpow.pop %v745
      %v747 = vsub.f32 %v740, 1.0
      %v748 = vsub.f32 %v742, 1.0
      %v749 = vsub.f32 %v744, 1.0
      %v750 = vsub.f32 %v746, 1.0
      %v751 = vsel %vm731, %v713, %v747
      %v752 = vsel %vm732, %v718, %v748
      %v753 = vsel %vm733, %v723, %v749
      %v754 = vsel %vm734, %v728, %v750
      %755 = vst.msk [vmem:[%s224] sm:$0xff] %vm333, %v751
      %756 = vst.msk [vmem:[%s224 + $0x8] sm:$0xff] %vm333, %v752
      %757 = vst.msk [vmem:[%s224 + $0x10] sm:$0xff] %vm333, %v753
      %758 = vst.msk [vmem:[%s224 + $0x18] sm:$0xff] %vm333, %v754
      %p759 = scmp.lt.s32.totalorder %s16, 1
      %s760 = scalar_select %p759, %s16, 1
      %s761 = smul.addr %s760, 4
      %s762 = smul.addr %s761, 8
      %s763 = scalar_lea.vmem %s5, %s762
      // Predicated region
      $region41: #{tpu_custom_call.1} parent=39 // pred_check
        %p764 = pneg %p144
      $region42: #{tpu_custom_call.1} parent=39 // pred_check_branch
        %766 = sbr.rel (%p764) target = $region44
      $region43: #{tpu_custom_call.1} parent=39 // pred_region
        _
      $region44: #{tpu_custom_call.1} parent=39 // pred_fallthru
        _
    $region40: #{tpu_custom_call.1} parent=5 // pred_fallthru
      _
    %p767 = scmp.le.s32.totalorder 2, %s11
    // Predicated region
    $region45: #{tpu_custom_call.1} parent=5 // pred_check
      %p768 = pneg %p767
    $region46: #{tpu_custom_call.1} parent=5 // pred_check_branch
      %770 = sbr.rel (%p768) target = $region48
    $region47: #{tpu_custom_call.1} parent=5 // pred_region
      %s771 = ssub.s32 %s11, 2
      // Predicated region
      $region49: #{tpu_custom_call.1} parent=47 // pred_check
        %p772 = pneg %p150
      $region50: #{tpu_custom_call.1} parent=47 // pred_check_branch
        %774 = sbr.rel (%p772) target = $region52
      $region51: #{tpu_custom_call.1} parent=47 // pred_region
        %p775 = scmp.lt.s32.totalorder %s17, 1
        %s776 = scalar_select %p775, %s17, 1
        %s777 = smul.addr %s776, 4
        %s778 = smul.addr %s777, 8
        %s779 = scalar_lea.vmem %s5, %s778
      $region52: #{tpu_custom_call.1} parent=47 // pred_fallthru
        _
    $region48: #{tpu_custom_call.1} parent=5 // pred_fallthru
      _
  $region6: #{tpu_custom_call.1} parent=0 // loop_footer
    %s15 = sadd.s32 1, %s11
  $region7: #{tpu_custom_call.1} parent=0 // loop_footer_branch
    %10 = sbr.rel target = $region3
  $region8: #{tpu_custom_call.1} parent=0 // loop_exit
    _

</llo_original>
